<compile_context>
chip_gen: v6e
topology: v6e:2x2x1
jax: 0.10.0
libtpu: 0.0.40
codegen_flags: <defaults>
</compile_context>

<pallas_src>
import functools

import jax
import jax.numpy as jnp
from jax import lax
from jax.experimental import pallas as pl
from jax.experimental.pallas import tpu as pltpu

CONFIDENCE_THRESH = 0.96837722
EPS = 1e-6


def _softmax_rows(z):
    """Row-wise (last-axis) softmax in f32; returns (probs, shifted_logits, sum_exp)."""
    zm = jnp.max(z, axis=-1, keepdims=True)
    zs = z - zm
    ze = jnp.exp(zs)
    se = jnp.sum(ze, axis=-1, keepdims=True)
    return ze / se, zs, se


def _masked_bce_partial(pred, tgt, conf, block_idx, *, thresh, n_valid, block_n,
                        log_pred):
    """Per-block partial sum of masked robust BCE, reduced to an (8, C) tile."""
    c = pred.shape[-1]
    keep = conf > thresh                               # (block_n, 1) bool
    if n_valid is not None:
        # Global row index -> mask out batch-padding rows (keeps the true-N sum exact).
        row = block_idx * block_n + lax.broadcasted_iota(jnp.int32, (block_n, 1), 0)
        keep = keep & (row < n_valid)
    mask = jnp.where(keep, 1.0, 0.0).astype(jnp.float32)

    if log_pred is None:
        log_pred = jnp.log(pred + EPS)                 # reference-faithful path
    aug = -(tgt * log_pred + (1.0 - tgt) * jnp.log(1.0 - pred + EPS))
    masked = aug * mask                                # (block_n, C)

    # Sublane-preserving reduce over rows: (block_n, C) -> (8, C).  Pure VPU adds,
    # no per-step sublane->scalar collapse; the wrapper does the final scalar sum.
    return masked.reshape(block_n // 8, 8, c).sum(axis=0)


def _self_ce_kernel_pair(x_ref, t_ref, o_ref, *, thresh, n_valid, block_n,
                         fuse_log_softmax):
    i = pl.program_id(0)
    x = x_ref[...].astype(jnp.float32)
    t = t_ref[...].astype(jnp.float32)
    pred, xs, xse = _softmax_rows(x)
    tgt, _, _ = _softmax_rows(t)
    conf = jnp.max(tgt, axis=-1, keepdims=True)
    log_pred = (xs - jnp.log(xse)) if fuse_log_softmax else None
    o_ref[...] = _masked_bce_partial(pred, tgt, conf, i, thresh=thresh,
                                     n_valid=n_valid, block_n=block_n,
                                     log_pred=log_pred)


def _self_ce_kernel_self(x_ref, o_ref, *, thresh, n_valid, block_n,
                         fuse_log_softmax):
    # target=None fast path: tgt == pred, one softmax, half the DMA traffic.
    i = pl.program_id(0)
    x = x_ref[...].astype(jnp.float32)
    pred, xs, xse = _softmax_rows(x)
    conf = jnp.max(pred, axis=-1, keepdims=True)
    log_pred = (xs - jnp.log(xse)) if fuse_log_softmax else None
    o_ref[...] = _masked_bce_partial(pred, pred, conf, i, thresh=thresh,
                                     n_valid=n_valid, block_n=block_n,
                                     log_pred=log_pred)


def _choose_block_n(n, c):
    """Row-block: multiple of 32, ~2 MiB of f32 per buffer, capped so the
    2-input x 2-buffer working set stays well inside v7x's smaller VMEM."""
    target_rows = (2 * 1024 * 1024) // (4 * max(c, 1))
    bn = max(32, min(2048, (target_rows // 32) * 32))
    n_up = ((n + 31) // 32) * 32              # don't exceed the (padded) batch
    return min(bn, n_up)


def self_cross_entropy_loss(logits, target_logits=None, *,
                            confidence_thresh=CONFIDENCE_THRESH,
                            reduction="mean",
                            block_n=None, fuse_log_softmax=False):
    """Pallas implementation of SelfCrossEntropyLoss.forward."""
    assert logits.ndim == 2
    if target_logits is not None:
        assert target_logits.shape == logits.shape
    if reduction not in ("mean", "sum", "batch_mean"):
        raise ValueError("reduction must be one of 'mean'|'sum'|'batch_mean'")
    n, c = logits.shape

    if block_n is None:
        block_n = _choose_block_n(n, c)
    assert block_n % 8 == 0, "block_n must be a multiple of 8 (sublane tile)"

    num_blocks = pl.cdiv(n, block_n)
    n_pad = num_blocks * block_n
    if n_pad != n:                            # pad batch; padded rows masked in-kernel
        logits = jnp.pad(logits, ((0, n_pad - n), (0, 0)))
        if target_logits is not None:
            target_logits = jnp.pad(target_logits, ((0, n_pad - n), (0, 0)))

    in_spec = pl.BlockSpec((block_n, c), lambda i: (i, 0))
    out_spec = pl.BlockSpec((8, c), lambda i: (i, 0))
    out_shape = jax.ShapeDtypeStruct((num_blocks * 8, c), jnp.float32)
    cparams = pltpu.CompilerParams(
        dimension_semantics=("parallel",),            # independent blocks -> 2 TCs on v7x
        vmem_limit_bytes=48 * 1024 * 1024,            # room for big tiles, v7x-safe
    )

    common = dict(thresh=float(confidence_thresh),    # Python float -> no captured const
                  n_valid=None if n_pad == n else n,  # skip row masking when no padding
                  block_n=block_n,
                  fuse_log_softmax=fuse_log_softmax)

    if target_logits is None:
        kernel = functools.partial(_self_ce_kernel_self, **common)
        partials = pl.pallas_call(
            kernel,
            out_shape=out_shape,
            grid=(num_blocks,),
            in_specs=[in_spec],
            out_specs=out_spec,
            compiler_params=cparams,
        )(logits)
    else:
        kernel = functools.partial(_self_ce_kernel_pair, **common)
        partials = pl.pallas_call(
            kernel,
            out_shape=out_shape,
            grid=(num_blocks,),
            in_specs=[in_spec, in_spec],
            out_specs=out_spec,
            compiler_params=cparams,
        )(logits, target_logits)

    total = jnp.sum(partials)                 # == sum_N sum_C (aug * mask)
    if reduction == "mean":
        return total / jnp.float32(n * c)
    if reduction == "sum":
        return total
    return total / jnp.float32(n)             # batch_mean


def _reference(logits, target_logits=None, confidence_thresh=CONFIDENCE_THRESH,
               reduction="mean"):
    pred = jax.nn.softmax(logits.astype(jnp.float32), axis=1)
    tgt = pred if target_logits is None else jax.nn.softmax(
        target_logits.astype(jnp.float32), axis=1)
    conf = jnp.max(tgt, axis=1)
    mask = (conf > confidence_thresh).astype(jnp.float32)
    aug = -(tgt * jnp.log(pred + EPS) + (1.0 - tgt) * jnp.log(1.0 - pred + EPS))
    if reduction == "mean":
        return jnp.mean(jnp.mean(aug, axis=1) * mask)
    if reduction == "sum":
        return jnp.sum(jnp.sum(aug, axis=1) * mask)
    return jnp.mean(jnp.sum(aug, axis=1) * mask)       # batch_mean


if __name__ == "__main__":
    key = jax.random.PRNGKey(0)
    k1, k2 = jax.random.split(key)
    N, C = 16, 32
    # scale logits so a few rows exceed the (very high) confidence threshold
    x = (8.0 * jax.random.normal(k1, (N, C))).astype(jnp.float32)   # input logits
    t = (8.0 * jax.random.normal(k2, (N, C))).astype(jnp.float32)   # target logits

    # target provided (auto block_n=32 -> batch is zero-padded 16->32 and masked)
    loss = self_cross_entropy_loss(x, t)
    jax.block_until_ready(loss)
    ref = _reference(x, t)
    assert jnp.allclose(loss, ref, rtol=1e-4, atol=1e-6), (loss, ref)

    # target=None fast path (self-distillation on its own softmax)
    loss_self = self_cross_entropy_loss(x, None)
    jax.block_until_ready(loss_self)
    ref_self = _reference(x, None)
    assert jnp.allclose(loss_self, ref_self, rtol=1e-4, atol=1e-6), (loss_self, ref_self)

    # multi-block parallel grid (explicit small block_n just to exercise the path)
    loss_mb = self_cross_entropy_loss(x, t, block_n=8)
    jax.block_until_ready(loss_mb)
    assert jnp.allclose(loss_mb, ref, rtol=1e-4, atol=1e-6), (loss_mb, ref)

    # other scalar reductions
    for red in ("sum", "batch_mean"):
        lv = self_cross_entropy_loss(x, t, reduction=red)
        jax.block_until_ready(lv)
        rv = _reference(x, t, reduction=red)
        assert jnp.allclose(lv, rv, rtol=1e-4, atol=1e-5), (red, lv, rv)

    print("KERNEL_OK")
</pallas_src>

<mosaic_0001>
module attributes {stable_mosaic.version = 11 : i64} {
  func.func @_self_ce_kernel_pair(%arg0: i32, %arg1: memref<32x32xf32, #tpu.memory_space<vmem>>, %arg2: memref<32x32xf32, #tpu.memory_space<vmem>>, %arg3: memref<8x32xf32, #tpu.memory_space<vmem>>) attributes {dimension_semantics = [#tpu.dimension_semantics<parallel>], iteration_bounds = array<i64: 1>, scalar_prefetch = 0 : i64, scratch_operands = 0 : i64, tpu.core_type = #tpu.core_type<tc>, window_params = [{transform_indices = @transform_0, window_bounds = array<i64: 32, 32>}, {transform_indices = @transform_1, window_bounds = array<i64: 32, 32>}, {transform_indices = @transform_2, window_bounds = array<i64: 8, 32>}]} {
    %c0 = arith.constant 0 : index
    %c0_0 = arith.constant 0 : index
    %0 = vector.load %arg1[%c0, %c0_0] : memref<32x32xf32, #tpu.memory_space<vmem>>, vector<32x32xf32>
    %c0_1 = arith.constant 0 : index
    %c0_2 = arith.constant 0 : index
    %1 = vector.load %arg2[%c0_1, %c0_2] : memref<32x32xf32, #tpu.memory_space<vmem>>, vector<32x32xf32>
    %cst = arith.constant dense<0xFF800000> : vector<32xf32>
    %2 = vector.multi_reduction <maximumf>, %0, %cst [1] : vector<32x32xf32> to vector<32xf32>
    %3 = vector.shape_cast %2 : vector<32xf32> to vector<32x1xf32>
    %4 = vector.broadcast %3 : vector<32x1xf32> to vector<32x32xf32>
    %5 = arith.subf %0, %4 : vector<32x32xf32>
    %6 = math.exp %5 : vector<32x32xf32>
    %cst_3 = arith.constant dense<0.000000e+00> : vector<32xf32>
    %7 = vector.multi_reduction <add>, %6, %cst_3 [1] : vector<32x32xf32> to vector<32xf32>
    %8 = vector.shape_cast %7 : vector<32xf32> to vector<32x1xf32>
    %9 = vector.broadcast %8 : vector<32x1xf32> to vector<32x32xf32>
    %10 = arith.divf %6, %9 : vector<32x32xf32>
    %cst_4 = arith.constant dense<0xFF800000> : vector<32xf32>
    %11 = vector.multi_reduction <maximumf>, %1, %cst_4 [1] : vector<32x32xf32> to vector<32xf32>
    %12 = vector.shape_cast %11 : vector<32xf32> to vector<32x1xf32>
    %13 = vector.broadcast %12 : vector<32x1xf32> to vector<32x32xf32>
    %14 = arith.subf %1, %13 : vector<32x32xf32>
    %15 = math.exp %14 : vector<32x32xf32>
    %cst_5 = arith.constant dense<0.000000e+00> : vector<32xf32>
    %16 = vector.multi_reduction <add>, %15, %cst_5 [1] : vector<32x32xf32> to vector<32xf32>
    %17 = vector.shape_cast %16 : vector<32xf32> to vector<32x1xf32>
    %18 = vector.broadcast %17 : vector<32x1xf32> to vector<32x32xf32>
    %19 = arith.divf %15, %18 : vector<32x32xf32>
    %cst_6 = arith.constant dense<0xFF800000> : vector<32xf32>
    %20 = vector.multi_reduction <maximumf>, %19, %cst_6 [1] : vector<32x32xf32> to vector<32xf32>
    %21 = vector.shape_cast %20 : vector<32xf32> to vector<32x1xf32>
    %cst_7 = arith.constant 0.968377232 : f32
    %22 = vector.broadcast %cst_7 : f32 to vector<32x1xf32>
    %23 = arith.cmpf ogt, %21, %22 : vector<32x1xf32>
    %c32_i32 = arith.constant 32 : i32
    %24 = arith.muli %arg0, %c32_i32 : i32
    %25 = tpu.iota {dimensions = array<i32: 0>} : vector<32x1xi32>
    %26 = vector.broadcast %24 : i32 to vector<32x1xi32>
    %27 = arith.addi %26, %25 : vector<32x1xi32>
    %c16_i32 = arith.constant 16 : i32
    %28 = vector.broadcast %c16_i32 : i32 to vector<32x1xi32>
    %29 = arith.cmpi slt, %27, %28 : vector<32x1xi32>
    %30 = arith.andi %23, %29 : vector<32x1xi1>
    %cst_8 = arith.constant 1.000000e+00 : f32
    %cst_9 = arith.constant 0.000000e+00 : f32
    %31 = vector.broadcast %cst_8 : f32 to vector<32x1xf32>
    %32 = vector.broadcast %cst_9 : f32 to vector<32x1xf32>
    %33 = arith.select %30, %31, %32 : vector<32x1xi1>, vector<32x1xf32>
    %cst_10 = arith.constant 9.99999997E-7 : f32
    %34 = vector.broadcast %cst_10 : f32 to vector<32x32xf32>
    %35 = arith.addf %10, %34 : vector<32x32xf32>
    %36 = math.log %35 : vector<32x32xf32>
    %37 = arith.mulf %19, %36 : vector<32x32xf32>
    %cst_11 = arith.constant 1.000000e+00 : f32
    %38 = vector.broadcast %cst_11 : f32 to vector<32x32xf32>
    %39 = arith.subf %38, %19 : vector<32x32xf32>
    %cst_12 = arith.constant 1.000000e+00 : f32
    %40 = vector.broadcast %cst_12 : f32 to vector<32x32xf32>
    %41 = arith.subf %40, %10 : vector<32x32xf32>
    %cst_13 = arith.constant 9.99999997E-7 : f32
    %42 = vector.broadcast %cst_13 : f32 to vector<32x32xf32>
    %43 = arith.addf %41, %42 : vector<32x32xf32>
    %44 = math.log %43 : vector<32x32xf32>
    %45 = arith.mulf %39, %44 : vector<32x32xf32>
    %46 = arith.addf %37, %45 : vector<32x32xf32>
    %cst_14 = arith.constant 0.000000e+00 : f32
    %47 = vector.broadcast %cst_14 : f32 to vector<32x32xf32>
    %48 = arith.subf %47, %46 : vector<32x32xf32>
    %49 = vector.broadcast %33 : vector<32x1xf32> to vector<32x32xf32>
    %50 = arith.mulf %48, %49 : vector<32x32xf32>
    %51 = vector.shape_cast %50 : vector<32x32xf32> to vector<4x8x32xf32>
    %cst_15 = arith.constant dense<0.000000e+00> : vector<8x32xf32>
    %52 = vector.multi_reduction <add>, %51, %cst_15 [0] : vector<4x8x32xf32> to vector<8x32xf32>
    %c0_16 = arith.constant 0 : index
    %c0_17 = arith.constant 0 : index
    %53 = vector.load %arg3[%c0_16, %c0_17] : memref<8x32xf32, #tpu.memory_space<vmem>>, vector<8x32xf32>
    tpu.vector_store %arg3[%c0_16, %c0_17], %52 {strides = array<i32>} : memref<8x32xf32, #tpu.memory_space<vmem>>, vector<8x32xf32>,
    return
  }
  func.func @transform_0(%arg0: i32) -> (i32, i32) {
    %c0_i32 = arith.constant 0 : i32
    %c0_i32_0 = arith.constant 0 : i32
    return %arg0, %c0_i32 : i32, i32
  }
  func.func @transform_1(%arg0: i32) -> (i32, i32) {
    %c0_i32 = arith.constant 0 : i32
    %c0_i32_0 = arith.constant 0 : i32
    return %arg0, %c0_i32 : i32, i32
  }
  func.func @transform_2(%arg0: i32) -> (i32, i32) {
    %c0_i32 = arith.constant 0 : i32
    %c0_i32_0 = arith.constant 0 : i32
    return %arg0, %c0_i32 : i32, i32
  }
}

</mosaic_0001>

<llo_original>
// kernel: tpu_custom_call.1
$region0: #{tpu_custom_call.1}
  #allocation0 [shape = 'u32[]', space=smem, size = 0x4, offset = 0x4, fixed_abs, tag = 'smem constant byte address 0x4 - core index']
  #allocation1 [shape = 'u32[144,128]{1,0:T(1,128)}', space=vmem, size = 0x12000, scoped, tag = 'internal scratch']
  %s0 = inlined_call_operand.hbm [shape: f32[32,32], index: 0, kind: input, shape index: {}]
  %s1 = inlined_call_operand.hbm [shape: f32[32,32], index: 1, kind: input, shape index: {}]
  %s2 = inlined_call_operand.hbm [shape: f32[8,32], index: 2, kind: output, shape index: {}]
  %s3 = sld [smem:[#allocation0]]
  $region26: #{tpu_custom_call.1} parent=0
    _
  %s5 = ssub.s32 1, %s3
  %s6 = scalar_select 0, %s5, %s3
  $region1: #{tpu_custom_call.1} parent=0
    #allocation2 [shape = 'u8[16384]{0}', space=vmem, size = 0x4000, scoped, tag = 'input window, operand 0, single buffered']
    #allocation3 [shape = 's32[1]{0}', space=sflag, size = 0x4, scoped, tag = 'scoped memory for tpu_custom_call.1']
    #allocation4 [shape = 's32[1]{0}', space=sflag, size = 0x4, scoped, tag = 'scoped memory for tpu_custom_call.1']
    #allocation5 [shape = 'u8[16384]{0}', space=vmem, size = 0x4000, scoped, tag = 'input window, operand 1, single buffered']
    #allocation6 [shape = 's32[1]{0}', space=sflag, size = 0x4, scoped, tag = 'scoped memory for tpu_custom_call.1']
    #allocation7 [shape = 'u8[4096]{0}', space=vmem, size = 0x1000, scoped, tag = 'output window, operand 0, single buffered']
    %7 = vsyncpa [#allocation3], 0
    %8 = vsyncpa [#allocation6], 0
    %9 = vsyncpa [#allocation4], 0
    // Predicated region
    $region2: #{tpu_custom_call.1} parent=1 // pred_check
      _
    $region3: #{tpu_custom_call.1} parent=1 // pred_check_branch
      %11 = sbr.rel (0) target = $region5
    $region4: #{tpu_custom_call.1} parent=1 // pred_region
      %s13 = ssub.s32 512, 512
      %14 = vsyncadd [#allocation3], %s13
      %s15 = sshll.u32 [#allocation2], 4
      %s16 = int_to_ptr.vmem [resolvable:$true] %s15
      %21 = dma.hbm_to_vmem [thread:$0]  %s0, 512, %s16, [#allocation3], 128, 128, 8
    $region5: #{tpu_custom_call.1} parent=1 // pred_fallthru
      _
    // Predicated region
    $region6: #{tpu_custom_call.1} parent=1 // pred_check
      _
    $region7: #{tpu_custom_call.1} parent=1 // pred_check_branch
      %23 = sbr.rel (0) target = $region9
    $region8: #{tpu_custom_call.1} parent=1 // pred_region
      %s25 = ssub.s32 512, 512
      %26 = vsyncadd [#allocation6], %s25
      %s27 = sshll.u32 [#allocation5], 4
      %s28 = int_to_ptr.vmem [resolvable:$true] %s27
      %33 = dma.hbm_to_vmem [thread:$0]  %s1, 512, %s28, [#allocation6], 128, 128, 8
    $region9: #{tpu_custom_call.1} parent=1 // pred_fallthru
      _
    // Predicated region
    $region10: #{tpu_custom_call.1} parent=1 // pred_check
      _
    $region11: #{tpu_custom_call.1} parent=1 // pred_check_branch
      %35 = sbr.rel (0) target = $region13
    $region12: #{tpu_custom_call.1} parent=1 // pred_region
      %36 = dma.done [#allocation3], 512
    $region13: #{tpu_custom_call.1} parent=1 // pred_fallthru
      _
    // Predicated region
    $region14: #{tpu_custom_call.1} parent=1 // pred_check
      _
    $region15: #{tpu_custom_call.1} parent=1 // pred_check_branch
      %38 = sbr.rel (0) target = $region17
    $region16: #{tpu_custom_call.1} parent=1 // pred_region
      %39 = dma.done [#allocation6], 512
    $region17: #{tpu_custom_call.1} parent=1 // pred_fallthru
      _
    %v40 = vld [vmem:[#allocation2] sm:$0xff]
    %v41 = vld [vmem:[#allocation2 + $0x8] sm:$0xff]
    %v42 = vld [vmem:[#allocation2 + $0x10] sm:$0xff]
    %v43 = vld [vmem:[#allocation2 + $0x18] sm:$0xff]
    %v44 = vld [vmem:[#allocation5] sm:$0xff]
    %v45 = vld [vmem:[#allocation5 + $0x8] sm:$0xff]
    %v46 = vld [vmem:[#allocation5 + $0x10] sm:$0xff]
    %v47 = vld [vmem:[#allocation5 + $0x18] sm:$0xff]
    %vm48 = vcmask 261120
    %v49 = vsel %vm48, %v40, -inf
    %50 = vmax.xlane.f32.xlu0 %v49
    %v51 = vpop.xlane.xlu0 %50
    %v52 = vsel %vm48, %v41, -inf
    %53 = vmax.xlane.f32.xlu0 %v52
    %v54 = vpop.xlane.xlu0 %53
    %v55 = vsel %vm48, %v42, -inf
    %56 = vmax.xlane.f32.xlu0 %v55
    %v57 = vpop.xlane.xlu0 %56
    %v58 = vsel %vm48, %v43, -inf
    %59 = vmax.xlane.f32.xlu0 %v58
    %v60 = vpop.xlane.xlu0 %59
    %v61 = vsub.f32 %v40, %v51
    %v62 = vsub.f32 %v41, %v54
    %v63 = vsub.f32 %v42, %v57
    %v64 = vsub.f32 %v43, %v60
    %v65 = vmul.f32 %v61, 1.442695
    %v66 = vpow.pop %v65
    %v67 = vmul.f32 %v62, 1.442695
    %v68 = vpow.pop %v67
    %v69 = vmul.f32 %v63, 1.442695
    %v70 = vpow.pop %v69
    %v71 = vmul.f32 %v64, 1.442695
    %v72 = vpow.pop %v71
    %v73 = vsel %vm48, %v66, 0.0
    %74 = vadd.xlane.f32.xlu0 %v73
    %v75 = vpop.xlane.xlu0 %74
    %v76 = vsel %vm48, %v68, 0.0
    %77 = vadd.xlane.f32.xlu0 %v76
    %v78 = vpop.xlane.xlu0 %77
    %v79 = vsel %vm48, %v70, 0.0
    %80 = vadd.xlane.f32.xlu0 %v79
    %v81 = vpop.xlane.xlu0 %80
    %v82 = vsel %vm48, %v72, 0.0
    %83 = vadd.xlane.f32.xlu0 %v82
    %v84 = vpop.xlane.xlu0 %83
    %v85 = vrcp.pop %v75
    %v86 = vmul.f32 %v66, %v85
    %v87 = vrcp.pop %v78
    %v88 = vmul.f32 %v68, %v87
    %v89 = vrcp.pop %v81
    %v90 = vmul.f32 %v70, %v89
    %v91 = vrcp.pop %v84
    %v92 = vmul.f32 %v72, %v91
    %v93 = vsel %vm48, %v44, -inf
    %94 = vmax.xlane.f32.xlu0 %v93
    %v95 = vpop.xlane.xlu0 %94
    %v96 = vsel %vm48, %v45, -inf
    %97 = vmax.xlane.f32.xlu0 %v96
    %v98 = vpop.xlane.xlu0 %97
    %v99 = vsel %vm48, %v46, -inf
    %100 = vmax.xlane.f32.xlu0 %v99
    %v101 = vpop.xlane.xlu0 %100
    %v102 = vsel %vm48, %v47, -inf
    %103 = vmax.xlane.f32.xlu0 %v102
    %v104 = vpop.xlane.xlu0 %103
    %v105 = vsub.f32 %v44, %v95
    %v106 = vsub.f32 %v45, %v98
    %v107 = vsub.f32 %v46, %v101
    %v108 = vsub.f32 %v47, %v104
    %v109 = vmul.f32 %v105, 1.442695
    %v110 = vpow.pop %v109
    %v111 = vmul.f32 %v106, 1.442695
    %v112 = vpow.pop %v111
    %v113 = vmul.f32 %v107, 1.442695
    %v114 = vpow.pop %v113
    %v115 = vmul.f32 %v108, 1.442695
    %v116 = vpow.pop %v115
    %v117 = vsel %vm48, %v110, 0.0
    %118 = vadd.xlane.f32.xlu0 %v117
    %v119 = vpop.xlane.xlu0 %118
    %v120 = vsel %vm48, %v112, 0.0
    %121 = vadd.xlane.f32.xlu0 %v120
    %v122 = vpop.xlane.xlu0 %121
    %v123 = vsel %vm48, %v114, 0.0
    %124 = vadd.xlane.f32.xlu0 %v123
    %v125 = vpop.xlane.xlu0 %124
    %v126 = vsel %vm48, %v116, 0.0
    %127 = vadd.xlane.f32.xlu0 %v126
    %v128 = vpop.xlane.xlu0 %127
    %v129 = vrcp.pop %v119
    %v130 = vmul.f32 %v110, %v129
    %v131 = vrcp.pop %v122
    %v132 = vmul.f32 %v112, %v131
    %v133 = vrcp.pop %v125
    %v134 = vmul.f32 %v114, %v133
    %v135 = vrcp.pop %v128
    %v136 = vmul.f32 %v116, %v135
    %v137 = vsel %vm48, %v130, -inf
    %138 = vmax.xlane.f32.xlu0 %v137
    %v139 = vpop.xlane.xlu0 %138
    %v140 = vsel %vm48, %v132, -inf
    %141 = vmax.xlane.f32.xlu0 %v140
    %v142 = vpop.xlane.xlu0 %141
    %v143 = vsel %vm48, %v134, -inf
    %144 = vmax.xlane.f32.xlu0 %v143
    %v145 = vpop.xlane.xlu0 %144
    %v146 = vsel %vm48, %v136, -inf
    %147 = vmax.xlane.f32.xlu0 %v146
    %v148 = vpop.xlane.xlu0 %147
    %vm149 = vcmp.gt.f32.partialorder %v139, 0.96837723
    %vm150 = vcmp.gt.f32.partialorder %v142, 0.96837723
    %vm151 = vcmp.gt.f32.partialorder %v145, 0.96837723
    %vm152 = vcmp.gt.f32.partialorder %v148, 0.96837723
    %s153 = smul.u32 0, 32
    %v154 = vlaneseq
    %v155 = vshrl.u32 %v154, 7
    %v156 = vadd.s32 %v155, 8
    %v157 = vadd.s32 %v155, 16
    %v158 = vadd.s32 %v155, 24
    %v159 = vstv %s153
    %v160 = vadd.s32 %v159, %v155
    %v161 = vadd.s32 %v159, %v156
    %v162 = vadd.s32 %v159, %v157
    %v163 = vadd.s32 %v159, %v158
    %vm164 = vcmp.lt.s32.totalorder %v160, 16
    %vm165 = vcmp.lt.s32.totalorder %v161, 16
    %vm166 = vcmp.lt.s32.totalorder %v162, 16
    %vm167 = vcmp.lt.s32.totalorder %v163, 16
    %vm168 = vmand %vm149, %vm164
    %vm169 = vmand %vm150, %vm165
    %vm170 = vmand %vm151, %vm166
    %vm171 = vmand %vm152, %vm167
    %v172 = vsel %vm168, 1.0, 0.0
    %v173 = vsel %vm169, 1.0, 0.0
    %v174 = vsel %vm170, 1.0, 0.0
    %v175 = vsel %vm171, 1.0, 0.0
    %v176 = vadd.f32 %v86, 1e-06
    %v177 = vadd.f32 %v88, 1e-06
    %v178 = vadd.f32 %v90, 1e-06
    %v179 = vadd.f32 %v92, 1e-06
    %v180 = vlog2.pop %v176
    %v181 = vmul.f32 %v180, 0.6931472
    %v182 = vlog2.pop %v177
    %v183 = vmul.f32 %v182, 0.6931472
    %v184 = vlog2.pop %v178
    %v185 = vmul.f32 %v184, 0.6931472
    %v186 = vlog2.pop %v179
    %v187 = vmul.f32 %v186, 0.6931472
    %v188 = vmul.f32 %v130, %v181
    %v189 = vmul.f32 %v132, %v183
    %v190 = vmul.f32 %v134, %v185
    %v191 = vmul.f32 %v136, %v187
    %v192 = vsub.f32 1.0, %v130
    %v193 = vsub.f32 1.0, %v132
    %v194 = vsub.f32 1.0, %v134
    %v195 = vsub.f32 1.0, %v136
    %v196 = vsub.f32 1.0, %v86
    %v197 = vsub.f32 1.0, %v88
    %v198 = vsub.f32 1.0, %v90
    %v199 = vsub.f32 1.0, %v92
    %v200 = vadd.f32 %v196, 1e-06
    %v201 = vadd.f32 %v197, 1e-06
    %v202 = vadd.f32 %v198, 1e-06
    %v203 = vadd.f32 %v199, 1e-06
    %v204 = vlog2.pop %v200
    %v205 = vmul.f32 %v204, 0.6931472
    %v206 = vlog2.pop %v201
    %v207 = vmul.f32 %v206, 0.6931472
    %v208 = vlog2.pop %v202
    %v209 = vmul.f32 %v208, 0.6931472
    %v210 = vlog2.pop %v203
    %v211 = vmul.f32 %v210, 0.6931472
    %v212 = vmul.f32 %v192, %v205
    %v213 = vmul.f32 %v193, %v207
    %v214 = vmul.f32 %v194, %v209
    %v215 = vmul.f32 %v195, %v211
    %v216 = vadd.f32 %v188, %v212
    %v217 = vadd.f32 %v189, %v213
    %v218 = vadd.f32 %v190, %v214
    %v219 = vadd.f32 %v191, %v215
    %v220 = vsub.f32 0.0, %v216
    %v221 = vsub.f32 0.0, %v217
    %v222 = vsub.f32 0.0, %v218
    %v223 = vsub.f32 0.0, %v219
    %v224 = vmul.f32 %v220, %v172
    %v225 = vmul.f32 %v221, %v173
    %v226 = vmul.f32 %v222, %v174
    %v227 = vmul.f32 %v223, %v175
    %v228 = vsel %vm48, %v224, 0.0
    %v229 = vsel %vm48, %v225, 0.0
    %v230 = vadd.f32 %v228, %v229
    %v231 = vsel %vm48, %v226, 0.0
    %v232 = vadd.f32 %v230, %v231
    %v233 = vsel %vm48, %v227, 0.0
    %v234 = vadd.f32 %v232, %v233
    %235 = vst.msk [vmem:[#allocation7] sm:$0xff] %vm48, %v234
    // Predicated region
    $region18: #{tpu_custom_call.1} parent=1 // pred_check
      _
    $region19: #{tpu_custom_call.1} parent=1 // pred_check_branch
      %237 = sbr.rel (0) target = $region21
    $region20: #{tpu_custom_call.1} parent=1 // pred_region
      %s239 = ssub.s32 128, 128
      %240 = vsyncadd [#allocation4], %s239
      %s242 = sshll.u32 [#allocation7], 4
      %s243 = int_to_ptr.vmem [resolvable:$true] %s242
      %245 = dma.vmem_to_hbm [thread:$0]  %s243, 128, %s2, [#allocation4]
    $region21: #{tpu_custom_call.1} parent=1 // pred_fallthru
      _
    // Predicated region
    $region22: #{tpu_custom_call.1} parent=1 // pred_check
      _
    $region23: #{tpu_custom_call.1} parent=1 // pred_check_branch
      %247 = sbr.rel (0) target = $region25
    $region24: #{tpu_custom_call.1} parent=1 // pred_region
      %248 = dma.done [#allocation4], 128
    $region25: #{tpu_custom_call.1} parent=1 // pred_fallthru
      _
    %249 = vsyncpa [#allocation3], 1
    %250 = vsyncpa [#allocation6], 1
    %251 = vsyncpa [#allocation4], 1

</llo_original>
